<compile_context>
chip_gen: v6e
topology: v6e:2x2x1
jax: 0.10.0
libtpu: 0.0.40
codegen_flags: <defaults>
</compile_context>

<pallas_src>
import jax
import jax.numpy as jnp
from jax.experimental import pallas as pl
from jax.experimental.pallas import tpu as pltpu


def _attention_l_kernel(s_ref, wp_ref, bp_ref, v_ref,
                        enc_out_ref, enc_feat_ref, mask_ref,
                        c_ref, attn_ref):
    f32 = jnp.float32

    # dec_fea = decode_proj_l(s_t_hat): (bb,H) @ (H,H) on the MXU, once per block.
    dec_fea = jnp.dot(s_ref[...].astype(f32), wp_ref[...].astype(f32),
                      preferred_element_type=f32) + bp_ref[...].astype(f32)

    # e = tanh(encoder_feature + dec_fea): upcast the streamed tile here (tanh -> EUP).
    e = jnp.tanh(enc_feat_ref[...].astype(f32) + dec_fea[:, None, :])       # (bb,T,H)

    # scores = v_l(e): contraction over H as a lane-reduce (VPU/XLU have slack in a
    # DMA-bound kernel; avoids bb tiny N=1 MXU matmuls with push/pop latency).
    v_row = v_ref[...].astype(f32)                                           # (1,H)
    scores = jnp.sum(e * v_row[None, :, :], axis=-1)                         # (bb,T)

    # Fused masked softmax: softmax -> *mask -> renormalize collapses to a single
    # normalization of exp(scores - max) * mask (algebraically exact).
    mask = mask_ref[...].astype(f32)                                         # (bb,T)
    m = jnp.max(scores, axis=-1, keepdims=True)
    w = jnp.exp(scores - m) * mask
    norm = jnp.sum(w, axis=-1, keepdims=True)
    # All-zero mask rows give 0/0 -> NaN, matching the PyTorch module's convention.
    attn = w / norm                                                          # (bb,T)
    attn_ref[...] = attn.astype(attn_ref.dtype)

    # c_t = sum_t attn * encoder_outputs: VPU multiply + sublane reduce over T
    # (avoids the M=1 batched MXU matmul; upcast the streamed enc tile in VMEM).
    c = jnp.sum(attn[:, :, None] * enc_out_ref[...].astype(f32), axis=1)     # (bb,H)
    c_ref[...] = c.astype(c_ref.dtype)


def _vmem_capacity_bytes():
    """Physical VMEM of the attached TPU; conservative fallback = v7x's 64 MiB."""
    try:
        info = pltpu.get_tpu_info()
        cap = getattr(info, "vmem_capacity_bytes", None)
        if cap:
            return int(cap)
    except Exception:
        pass
    return 64 * 1024 * 1024


def _choose_block_b(B, T, H, in_itemsize, budget_bytes):
    """Pick a batch block that fits the VMEM budget, keeps >=2 grid steps (so the
    parallel axis can split across v7x's two TensorCores) and keeps the 2-D blocks
    sublane-aligned (multiple of 8, or the whole batch)."""
    # Per batch-row VMEM: the two streamed (.,T,H) tiles (double-buffered by the
    # pipeline) + ~4 f32 (T,H) intermediates (upcasts, e, attn-weighted product)
    # + the small double-buffered 2-D in/out blocks.
    bytes_per_row = (2 * 2 * T * H * in_itemsize
                     + 4 * T * H * 4
                     + 2 * 2 * (H + T) * 4)
    fixed = 2 * (H * H + 2 * H) * 4            # resident W / b / v (double-buffered)

    bb = int(max(1, (budget_bytes - fixed) // max(bytes_per_row, 1)))
    bb = min(bb, B)
    if B >= 2:
        bb = min(bb, pl.cdiv(B, 2))            # keep grid_b >= 2 for megacore sharding
    if bb >= B:
        return B, bytes_per_row, fixed
    if bb >= 8:
        bb = (bb // 8) * 8                     # sublane-aligned 2-D blocks
    else:
        bb = min(8, B)                         # see TODO(synk) about a T-chunk loop
    return int(bb), bytes_per_row, fixed


def attention_l(s_t_hat, W_proj, b_proj, v_w,
                encoder_outputs, encoder_feature, enc_padding_mask,
                *, block_b=None):
    """Pallas forward of Attention_L.

    Shapes:
      s_t_hat          (B, H)
      W_proj           (H, H)   decode_proj_l weight in x @ W layout (torch weight.T)
      b_proj           (H,)     decode_proj_l bias
      v_w              (1, H)   v_l weight (Linear(H, 1, bias=False))
      encoder_outputs  (B, T, H)
      encoder_feature  (B*T, H)
      enc_padding_mask (B, T)
    Returns (c_t (B, H), attn_dist (B, T)).
    """
    B, T, H = encoder_outputs.shape
    f32 = jnp.float32

    # Contiguous metadata reshape only (free under jit) -- no cast, no pad of the
    # big tensors: they are streamed in their native dtype.
    enc_feat = encoder_feature.reshape(B, T, H)
    b_row = b_proj.reshape(1, H)
    v_row = v_w.reshape(1, H)

    in_itemsize = max(encoder_outputs.dtype.itemsize, enc_feat.dtype.itemsize)

    capacity = _vmem_capacity_bytes()
    budget = min((capacity * 5) // 8, 96 * 1024 * 1024)   # ~40 MiB on v7x, ~80 MiB on v5e/v6e
    auto_bb, bytes_per_row, fixed = _choose_block_b(B, T, H, in_itemsize, budget)
    if block_b is None:
        block_b = auto_bb
    block_b = int(max(1, min(block_b, B)))
    grid_b = pl.cdiv(B, block_b)
    # NOTE: if block_b does not divide B, Pallas masks the ragged last block's
    # writes; rows are computed independently so the pad rows cannot contaminate
    # real output rows.

    est_vmem = fixed + block_b * bytes_per_row + (4 << 20)
    vmem_limit = int(min(capacity * 3 // 4,
                         max(est_vmem + est_vmem // 2, 32 << 20)))

    cost = pl.CostEstimate(
        flops=4 * B * T * H + 2 * B * H * H,
        transcendentals=B * T * H + B * T,
        bytes_accessed=2 * B * T * H * in_itemsize
                       + B * (2 * H + 2 * T) * 4
                       + (H * H + 2 * H) * 4,
    )

    grid_spec = pltpu.PrefetchScalarGridSpec(
        num_scalar_prefetch=0,
        grid=(grid_b,),
        in_specs=[
            pl.BlockSpec((block_b, H), lambda i: (i, 0)),        # s_t_hat (2-D, lane-dense)
            pl.BlockSpec((H, H), lambda i: (0, 0)),              # decode_proj_l weight (resident)
            pl.BlockSpec((1, H), lambda i: (0, 0)),              # decode_proj_l bias   (resident)
            pl.BlockSpec((1, H), lambda i: (0, 0)),              # v_l weight           (resident)
            pl.BlockSpec((block_b, T, H), lambda i: (i, 0, 0)),  # encoder_outputs (streamed, native dtype)
            pl.BlockSpec((block_b, T, H), lambda i: (i, 0, 0)),  # encoder_feature (streamed, native dtype)
            pl.BlockSpec((block_b, T), lambda i: (i, 0)),        # enc_padding_mask (2-D)
        ],
        out_specs=(
            pl.BlockSpec((block_b, H), lambda i: (i, 0)),        # c_t       (2-D, lane-dense)
            pl.BlockSpec((block_b, T), lambda i: (i, 0)),        # attn_dist (2-D, lane-dense)
        ),
    )

    c_t, attn = pl.pallas_call(
        _attention_l_kernel,
        out_shape=(jax.ShapeDtypeStruct((B, H), f32),
                   jax.ShapeDtypeStruct((B, T), f32)),
        grid_spec=grid_spec,
        cost_estimate=cost,
        compiler_params=pltpu.CompilerParams(
            dimension_semantics=("parallel",),
            vmem_limit_bytes=vmem_limit),
    )(s_t_hat, W_proj, b_row, v_row, encoder_outputs, enc_feat, enc_padding_mask)

    return c_t, attn


def reference(s_t_hat, W_proj, b_proj, v_w, encoder_outputs, encoder_feature, enc_padding_mask):
    B, T, H = encoder_outputs.shape
    dec_fea = s_t_hat @ W_proj + b_proj.reshape(1, H)
    feat = encoder_feature.reshape(B, T, H) + dec_fea[:, None, :]
    e = jnp.tanh(feat)
    scores = jnp.sum(e * v_w.reshape(1, 1, H), axis=-1)
    soft = jax.nn.softmax(scores, axis=-1)
    attn_ = soft * enc_padding_mask
    attn = attn_ / jnp.sum(attn_, axis=-1, keepdims=True)
    c_t = jnp.sum(attn[:, :, None] * encoder_outputs, axis=1)
    return c_t, attn


if __name__ == "__main__":
    B, T, H = 16, 8, 32  # batch, enc sequence length t_k, config.hidden_dim

    key = jax.random.PRNGKey(0)
    k1, k2, k3, k4, k5, k6 = jax.random.split(key, 6)

    # Deterministic synthetic parameters (shapes from nn.Linear in __init__).
    W_proj = jax.random.normal(k1, (H, H), jnp.float32) * 0.1   # decode_proj_l weight (x @ W layout)
    b_proj = jax.random.normal(k2, (H,), jnp.float32) * 0.1     # decode_proj_l bias
    v_w    = jax.random.normal(k3, (1, H), jnp.float32) * 0.1   # v_l weight (no bias)

    # Inputs.
    s_t_hat = jax.random.normal(k4, (B, H), jnp.float32)
    encoder_outputs = jax.random.normal(k5, (B, T, H), jnp.float32)
    encoder_feature = jax.random.normal(k6, (B * T, H), jnp.float32)
    lengths = (jnp.arange(B) % T) + 1          # 1..T valid positions; no all-zero rows
    enc_padding_mask = (jnp.arange(T)[None, :] < lengths[:, None]).astype(jnp.float32)

    # block_b=None auto-sizes; at these shapes it picks block_b=8 -> grid=(2,),
    # exercising the batch pipeline (and megacore sharding on v7x).
    c_t, attn_dist = attention_l(s_t_hat, W_proj, b_proj, v_w,
                                 encoder_outputs, encoder_feature, enc_padding_mask)
    jax.block_until_ready((c_t, attn_dist))

    c_ref, a_ref = reference(s_t_hat, W_proj, b_proj, v_w,
                             encoder_outputs, encoder_feature, enc_padding_mask)
    assert jnp.allclose(c_t, c_ref, atol=1e-5, rtol=1e-5)
    assert jnp.allclose(attn_dist, a_ref, atol=1e-5, rtol=1e-5)

    print("KERNEL_OK")
</pallas_src>

<mosaic_0001>
module attributes {stable_mosaic.version = 11 : i64} {
  func.func @_attention_l_kernel(%arg0: i32, %arg1: memref<8x32xf32, #tpu.memory_space<vmem>>, %arg2: memref<32x32xf32, #tpu.memory_space<vmem>>, %arg3: memref<1x32xf32, #tpu.memory_space<vmem>>, %arg4: memref<1x32xf32, #tpu.memory_space<vmem>>, %arg5: memref<8x8x32xf32, #tpu.memory_space<vmem>>, %arg6: memref<8x8x32xf32, #tpu.memory_space<vmem>>, %arg7: memref<8x8xf32, #tpu.memory_space<vmem>>, %arg8: memref<8x32xf32, #tpu.memory_space<vmem>>, %arg9: memref<8x8xf32, #tpu.memory_space<vmem>>) attributes {dimension_semantics = [#tpu.dimension_semantics<parallel>], iteration_bounds = array<i64: 2>, scalar_prefetch = 0 : i64, scratch_operands = 0 : i64, tpu.core_type = #tpu.core_type<tc>, window_params = [{transform_indices = @transform_0, window_bounds = array<i64: 8, 32>}, {pipeline_mode = #tpu.pipeline_mode<synchronous>, transform_indices = @transform_1, window_bounds = array<i64: 32, 32>}, {pipeline_mode = #tpu.pipeline_mode<synchronous>, transform_indices = @transform_2, window_bounds = array<i64: 1, 32>}, {pipeline_mode = #tpu.pipeline_mode<synchronous>, transform_indices = @transform_3, window_bounds = array<i64: 1, 32>}, {transform_indices = @transform_4, window_bounds = array<i64: 8, 8, 32>}, {transform_indices = @transform_5, window_bounds = array<i64: 8, 8, 32>}, {transform_indices = @transform_6, window_bounds = array<i64: 8, 8>}, {transform_indices = @transform_7, window_bounds = array<i64: 8, 32>}, {transform_indices = @transform_8, window_bounds = array<i64: 8, 8>}]} {
    %c0 = arith.constant 0 : index
    %c0_0 = arith.constant 0 : index
    %0 = vector.load %arg1[%c0, %c0_0] : memref<8x32xf32, #tpu.memory_space<vmem>>, vector<8x32xf32>
    %c0_1 = arith.constant 0 : index
    %c0_2 = arith.constant 0 : index
    %1 = vector.load %arg2[%c0_1, %c0_2] : memref<32x32xf32, #tpu.memory_space<vmem>>, vector<32x32xf32>
    %cst = arith.constant dense<0.000000e+00> : vector<8x32xf32>
    %2 = tpu.matmul %0, %1, %cst {dimension_numbers = #tpu.dot_dimension_numbers<[1], [0], [0], [1], [0, 0, 1, 1], [], []>} : vector<8x32xf32>, vector<32x32xf32>, vector<8x32xf32> -> vector<8x32xf32>
    %c0_3 = arith.constant 0 : index
    %c0_4 = arith.constant 0 : index
    %3 = vector.load %arg3[%c0_3, %c0_4] : memref<1x32xf32, #tpu.memory_space<vmem>>, vector<1x32xf32>
    %4 = vector.broadcast %3 : vector<1x32xf32> to vector<8x32xf32>
    %5 = arith.addf %2, %4 : vector<8x32xf32>
    %c0_5 = arith.constant 0 : index
    %c0_6 = arith.constant 0 : index
    %c0_7 = arith.constant 0 : index
    %6 = vector.load %arg6[%c0_5, %c0_6, %c0_7] : memref<8x8x32xf32, #tpu.memory_space<vmem>>, vector<8x8x32xf32>
    %7 = vector.shape_cast %5 : vector<8x32xf32> to vector<8x1x32xf32>
    %8 = vector.broadcast %7 : vector<8x1x32xf32> to vector<8x8x32xf32>
    %9 = arith.addf %6, %8 : vector<8x8x32xf32>
    %10 = math.tanh %9 : vector<8x8x32xf32>
    %c0_8 = arith.constant 0 : index
    %c0_9 = arith.constant 0 : index
    %11 = vector.load %arg4[%c0_8, %c0_9] : memref<1x32xf32, #tpu.memory_space<vmem>>, vector<1x32xf32>
    %12 = vector.shape_cast %11 : vector<1x32xf32> to vector<1x1x32xf32>
    %13 = vector.broadcast %12 : vector<1x1x32xf32> to vector<8x8x32xf32>
    %14 = arith.mulf %10, %13 : vector<8x8x32xf32>
    %cst_10 = arith.constant dense<0.000000e+00> : vector<8x8xf32>
    %15 = vector.multi_reduction <add>, %14, %cst_10 [2] : vector<8x8x32xf32> to vector<8x8xf32>
    %c0_11 = arith.constant 0 : index
    %c0_12 = arith.constant 0 : index
    %16 = vector.load %arg7[%c0_11, %c0_12] : memref<8x8xf32, #tpu.memory_space<vmem>>, vector<8x8xf32>
    %cst_13 = arith.constant dense<0xFF800000> : vector<8xf32>
    %17 = vector.multi_reduction <maximumf>, %15, %cst_13 [1] : vector<8x8xf32> to vector<8xf32>
    %18 = vector.shape_cast %17 : vector<8xf32> to vector<8x1xf32>
    %19 = vector.broadcast %18 : vector<8x1xf32> to vector<8x8xf32>
    %20 = arith.subf %15, %19 : vector<8x8xf32>
    %21 = math.exp %20 : vector<8x8xf32>
    %22 = arith.mulf %21, %16 : vector<8x8xf32>
    %cst_14 = arith.constant dense<0.000000e+00> : vector<8xf32>
    %23 = vector.multi_reduction <add>, %22, %cst_14 [1] : vector<8x8xf32> to vector<8xf32>
    %24 = vector.shape_cast %23 : vector<8xf32> to vector<8x1xf32>
    %25 = vector.broadcast %24 : vector<8x1xf32> to vector<8x8xf32>
    %26 = arith.divf %22, %25 : vector<8x8xf32>
    %c0_15 = arith.constant 0 : index
    %c0_16 = arith.constant 0 : index
    %27 = vector.load %arg9[%c0_15, %c0_16] : memref<8x8xf32, #tpu.memory_space<vmem>>, vector<8x8xf32>
    tpu.vector_store %arg9[%c0_15, %c0_16], %26 {strides = array<i32>} : memref<8x8xf32, #tpu.memory_space<vmem>>, vector<8x8xf32>,
    %28 = vector.shape_cast %26 : vector<8x8xf32> to vector<8x8x1xf32>
    %c0_17 = arith.constant 0 : index
    %c0_18 = arith.constant 0 : index
    %c0_19 = arith.constant 0 : index
    %29 = vector.load %arg5[%c0_17, %c0_18, %c0_19] : memref<8x8x32xf32, #tpu.memory_space<vmem>>, vector<8x8x32xf32>
    %30 = vector.broadcast %28 : vector<8x8x1xf32> to vector<8x8x32xf32>
    %31 = arith.mulf %30, %29 : vector<8x8x32xf32>
    %cst_20 = arith.constant dense<0.000000e+00> : vector<8x32xf32>
    %32 = vector.multi_reduction <add>, %31, %cst_20 [1] : vector<8x8x32xf32> to vector<8x32xf32>
    %c0_21 = arith.constant 0 : index
    %c0_22 = arith.constant 0 : index
    %33 = vector.load %arg8[%c0_21, %c0_22] : memref<8x32xf32, #tpu.memory_space<vmem>>, vector<8x32xf32>
    tpu.vector_store %arg8[%c0_21, %c0_22], %32 {strides = array<i32>} : memref<8x32xf32, #tpu.memory_space<vmem>>, vector<8x32xf32>,
    return
  }
  func.func @transform_0(%arg0: i32) -> (i32, i32) {
    %c0_i32 = arith.constant 0 : i32
    %c0_i32_0 = arith.constant 0 : i32
    return %arg0, %c0_i32 : i32, i32
  }
  func.func @transform_1(%arg0: i32) -> (i32, i32) {
    %c0_i32 = arith.constant 0 : i32
    %c0_i32_0 = arith.constant 0 : i32
    %c0_i32_1 = arith.constant 0 : i32
    return %c0_i32, %c0_i32_0 : i32, i32
  }
  func.func @transform_2(%arg0: i32) -> (i32, i32) {
    %c0_i32 = arith.constant 0 : i32
    %c0_i32_0 = arith.constant 0 : i32
    %c0_i32_1 = arith.constant 0 : i32
    return %c0_i32, %c0_i32_0 : i32, i32
  }
  func.func @transform_3(%arg0: i32) -> (i32, i32) {
    %c0_i32 = arith.constant 0 : i32
    %c0_i32_0 = arith.constant 0 : i32
    %c0_i32_1 = arith.constant 0 : i32
    return %c0_i32, %c0_i32_0 : i32, i32
  }
  func.func @transform_4(%arg0: i32) -> (i32, i32, i32) {
    %c0_i32 = arith.constant 0 : i32
    %c0_i32_0 = arith.constant 0 : i32
    %c0_i32_1 = arith.constant 0 : i32
    return %arg0, %c0_i32, %c0_i32_0 : i32, i32, i32
  }
  func.func @transform_5(%arg0: i32) -> (i32, i32, i32) {
    %c0_i32 = arith.constant 0 : i32
    %c0_i32_0 = arith.constant 0 : i32
    %c0_i32_1 = arith.constant 0 : i32
    return %arg0, %c0_i32, %c0_i32_0 : i32, i32, i32
  }
  func.func @transform_6(%arg0: i32) -> (i32, i32) {
    %c0_i32 = arith.constant 0 : i32
    %c0_i32_0 = arith.constant 0 : i32
    return %arg0, %c0_i32 : i32, i32
  }
  func.func @transform_7(%arg0: i32) -> (i32, i32) {
    %c0_i32 = arith.constant 0 : i32
    %c0_i32_0 = arith.constant 0 : i32
    return %arg0, %c0_i32 : i32, i32
  }
  func.func @transform_8(%arg0: i32) -> (i32, i32) {
    %c0_i32 = arith.constant 0 : i32
    %c0_i32_0 = arith.constant 0 : i32
    return %arg0, %c0_i32 : i32, i32
  }
}

</mosaic_0001>

<llo_original>
// kernel: tpu_custom_call.1
$region0: #{tpu_custom_call.1}
  #allocation0 [shape = 'u32[]', space=smem, size = 0x4, offset = 0x4, fixed_abs, tag = 'smem constant byte address 0x4 - core index']
  #allocation1 [shape = 'u32[144,128]{1,0:T(1,128)}', space=vmem, size = 0x12000, scoped, tag = 'internal scratch']
  %s0 = inlined_call_operand.vmem [shape: f32[16,32], index: 0, kind: input, shape index: {}]
  %s1 = inlined_call_operand.hbm [shape: f32[32,32], index: 1, kind: input, shape index: {}]
  %s2 = inlined_call_operand.vmem [shape: f32[1,32], index: 2, kind: input, shape index: {}]
  %s3 = inlined_call_operand.vmem [shape: f32[1,32], index: 3, kind: input, shape index: {}]
  %s4 = inlined_call_operand.hbm [shape: f32[16,8,32], index: 4, kind: input, shape index: {}]
  %s5 = inlined_call_operand.hbm [shape: f32[16,8,32], index: 5, kind: input, shape index: {}]
  %s6 = inlined_call_operand.vmem [shape: f32[16,8], index: 6, kind: input, shape index: {}]
  %s7 = inlined_call_operand.hbm [shape: f32[16,32], index: 7, kind: output, shape index: {0}]
  %s8 = inlined_call_operand.vmem [shape: f32[16,8], index: 8, kind: output, shape index: {1}]
  %9 = xla_tuple %s7, %s8
  %s10 = sld [smem:[#allocation0]]
  $region81: #{tpu_custom_call.1} parent=0
    _
  %s12 = ssub.s32 1, %s10
  %s13 = scalar_select 0, %s12, %s10
  $region1: #{tpu_custom_call.1} parent=0
    #allocation2 [shape = 'u8[16384]{0}', space=vmem, size = 0x4000, scoped, tag = 'input window, operand 1, single buffered']
    #allocation3 [shape = 's32[2]{0}', space=sflag, size = 0x8, scoped, tag = 'scoped memory for tpu_custom_call.1']
    #allocation4 [shape = 's32[2]{0}', space=sflag, size = 0x8, scoped, tag = 'scoped memory for tpu_custom_call.1']
    #allocation5 [shape = 'u8[65536]{0}', space=vmem, size = 0x10000, scoped, tag = 'input window, operand 4']
    #allocation6 [shape = 's32[2]{0}', space=sflag, size = 0x8, scoped, tag = 'scoped memory for tpu_custom_call.1']
    #allocation7 [shape = 'u8[65536]{0}', space=vmem, size = 0x10000, scoped, tag = 'input window, operand 5']
    #allocation8 [shape = 'u8[8192]{0}', space=vmem, size = 0x2000, scoped, tag = 'output window, operand 0']
    %14 = vsyncpa [#allocation3], 0
    %15 = vsyncpa [#allocation6], 0
    %s16 = scalar_lea.sflag [#allocation6], 1
    %17 = vsyncpa %s16, 0
    %18 = vsyncpa [#allocation4], 0
    %s19 = scalar_lea.sflag [#allocation4], 1
    %20 = vsyncpa %s19, 0
    loop: start=0, step=1, limit=4
    $region2: #{tpu_custom_call.1} parent=1 // loop_pre_header
      _
    $region3: #{tpu_custom_call.1} parent=1 // loop_header
      %s22 = sphi 0, %s26
      %p23 = scmp.ge.s32.totalorder %s22, 4
      %s32 = sphi 0, %s34
      %s35 = sphi 0, %s32
      %s36 = sphi 0, %s35
      %s52 = sphi 0, %s36
      %s56 = sphi 0, %s56
      %s58 = sphi 0, %s56
      %s59 = sphi 0, %s58
      %s73 = sphi 0, %s59
      %s77 = sphi 0, %s77
      %s79 = sphi 0, %s77
      %s80 = sphi 0, %s79
      %s94 = sphi 0, %s80
      %s98 = sphi 0, %s98
      %s100 = sphi 0, %s98
      %s101 = sphi 0, %s100
      %s115 = sphi 0, %s101
      %s121 = sphi 0, %s123
      %s124 = sphi 0, %s121
      %s125 = sphi 0, %s124
      %s141 = sphi 0, %s125
      %s147 = sphi 0, %s149
      %s150 = sphi 0, %s147
      %s151 = sphi 0, %s150
      %s167 = sphi 0, %s151
      %s173 = sphi 0, %s175
      %s176 = sphi 0, %s173
      %s177 = sphi 0, %s176
      %s193 = sphi 0, %s177
      %s199 = sphi 0, %s201
      %s202 = sphi 0, %s199
      %s203 = sphi 0, %s202
      %s219 = sphi 0, %s203
      %s225 = sphi 0, %s227
      %s228 = sphi 0, %s225
      %s229 = sphi 0, %s228
      %s245 = sphi 0, %s229
    $region4: #{tpu_custom_call.1} parent=1 // loop_header_branch
      %25 = sbr.rel (%p23) target = $region8
    $region5: #{tpu_custom_call.1} parent=1 // loop_body
      %s27 = ssub.s32 %s22, 1
      %s28 = ssub.s32 %s22, 2
      %s29 = sadd.s32 %s22, 1
      %s30 = ssub.s32 %s22, %s29
      %p31 = scmp.eq.s32.totalorder %s30, 0
      %s33 = sadd.s32 %s32, 1
      %s34 = scalar_select %p31, %s32, %s33
      %p37 = pneg %p31
      %p38 = scmp.eq.s32.totalorder %s22, 1
      %p39 = por %p37, %p38
      %p40 = scmp.ne.s32.totalorder %s32, %s35
      %p41 = scmp.eq.s32.totalorder %s22, 0
      %p42 = por %p40, %p41
      %p43 = scmp.ne.s32.totalorder %s32, %s35
      %p44 = scmp.eq.s32.totalorder %s27, 1
      %p45 = por %p43, %p44
      %p46 = scmp.ne.s32.totalorder %s35, %s36
      %p47 = scmp.eq.s32.totalorder %s27, 0
      %p48 = por %p46, %p47
      %p49 = scmp.ne.s32.totalorder %s35, %s36
      %p50 = scmp.eq.s32.totalorder %s28, 1
      %p51 = por %p49, %p50
      %p53 = scmp.ne.s32.totalorder %s36, %s52
      %p54 = scmp.eq.s32.totalorder %s28, 0
      %p55 = por %p53, %p54
      %s57 = sadd.s32 %s56, 1
      %p60 = scmp.eq.s32.totalorder %s22, 1
      %p61 = scmp.ne.s32.totalorder %s56, %s58
      %p62 = scmp.eq.s32.totalorder %s22, 0
      %p63 = por %p61, %p62
      %p64 = scmp.ne.s32.totalorder %s56, %s58
      %p65 = scmp.eq.s32.totalorder %s27, 1
      %p66 = por %p64, %p65
      %p67 = scmp.ne.s32.totalorder %s58, %s59
      %p68 = scmp.eq.s32.totalorder %s27, 0
      %p69 = por %p67, %p68
      %p70 = scmp.ne.s32.totalorder %s58, %s59
      %p71 = scmp.eq.s32.totalorder %s28, 1
      %p72 = por %p70, %p71
      %p74 = scmp.ne.s32.totalorder %s59, %s73
      %p75 = scmp.eq.s32.totalorder %s28, 0
      %p76 = por %p74, %p75
      %s78 = sadd.s32 %s77, 1
      %p81 = scmp.eq.s32.totalorder %s22, 1
      %p82 = scmp.ne.s32.totalorder %s77, %s79
      %p83 = scmp.eq.s32.totalorder %s22, 0
      %p84 = por %p82, %p83
      %p85 = scmp.ne.s32.totalorder %s77, %s79
      %p86 = scmp.eq.s32.totalorder %s27, 1
      %p87 = por %p85, %p86
      %p88 = scmp.ne.s32.totalorder %s79, %s80
      %p89 = scmp.eq.s32.totalorder %s27, 0
      %p90 = por %p88, %p89
      %p91 = scmp.ne.s32.totalorder %s79, %s80
      %p92 = scmp.eq.s32.totalorder %s28, 1
      %p93 = por %p91, %p92
      %p95 = scmp.ne.s32.totalorder %s80, %s94
      %p96 = scmp.eq.s32.totalorder %s28, 0
      %p97 = por %p95, %p96
      %s99 = sadd.s32 %s98, 1
      %p102 = scmp.eq.s32.totalorder %s22, 1
      %p103 = scmp.ne.s32.totalorder %s98, %s100
      %p104 = scmp.eq.s32.totalorder %s22, 0
      %p105 = por %p103, %p104
      %p106 = scmp.ne.s32.totalorder %s98, %s100
      %p107 = scmp.eq.s32.totalorder %s27, 1
      %p108 = por %p106, %p107
      %p109 = scmp.ne.s32.totalorder %s100, %s101
      %p110 = scmp.eq.s32.totalorder %s27, 0
      %p111 = por %p109, %p110
      %p112 = scmp.ne.s32.totalorder %s100, %s101
      %p113 = scmp.eq.s32.totalorder %s28, 1
      %p114 = por %p112, %p113
      %p116 = scmp.ne.s32.totalorder %s101, %s115
      %p117 = scmp.eq.s32.totalorder %s28, 0
      %p118 = por %p116, %p117
      %s119 = ssub.s32 %s22, %s29
      %p120 = scmp.eq.s32.totalorder %s119, 0
      %s122 = sadd.s32 %s121, 1
      %s123 = scalar_select %p120, %s121, %s122
      %p126 = pneg %p120
      %p127 = scmp.eq.s32.totalorder %s22, 1
      %p128 = por %p126, %p127
      %p129 = scmp.ne.s32.totalorder %s121, %s124
      %p130 = scmp.eq.s32.totalorder %s22, 0
      %p131 = por %p129, %p130
      %p132 = scmp.ne.s32.totalorder %s121, %s124
      %p133 = scmp.eq.s32.totalorder %s27, 1
      %p134 = por %p132, %p133
      %p135 = scmp.ne.s32.totalorder %s124, %s125
      %p136 = scmp.eq.s32.totalorder %s27, 0
      %p137 = por %p135, %p136
      %p138 = scmp.ne.s32.totalorder %s124, %s125
      %p139 = scmp.eq.s32.totalorder %s28, 1
      %p140 = por %p138, %p139
      %p142 = scmp.ne.s32.totalorder %s125, %s141
      %p143 = scmp.eq.s32.totalorder %s28, 0
      %p144 = por %p142, %p143
      %s145 = ssub.s32 %s22, %s29
      %p146 = scmp.eq.s32.totalorder %s145, 0
      %s148 = sadd.s32 %s147, 1
      %s149 = scalar_select %p146, %s147, %s148
      %p152 = pneg %p146
      %p153 = scmp.eq.s32.totalorder %s22, 1
      %p154 = por %p152, %p153
      %p155 = scmp.ne.s32.totalorder %s147, %s150
      %p156 = scmp.eq.s32.totalorder %s22, 0
      %p157 = por %p155, %p156
      %p158 = scmp.ne.s32.totalorder %s147, %s150
      %p159 = scmp.eq.s32.totalorder %s27, 1
      %p160 = por %p158, %p159
      %p161 = scmp.ne.s32.totalorder %s150, %s151
      %p162 = scmp.eq.s32.totalorder %s27, 0
      %p163 = por %p161, %p162
      %p164 = scmp.ne.s32.totalorder %s150, %s151
      %p165 = scmp.eq.s32.totalorder %s28, 1
      %p166 = por %p164, %p165
      %p168 = scmp.ne.s32.totalorder %s151, %s167
      %p169 = scmp.eq.s32.totalorder %s28, 0
      %p170 = por %p168, %p169
      %s171 = ssub.s32 %s22, %s29
      %p172 = scmp.eq.s32.totalorder %s171, 0
      %s174 = sadd.s32 %s173, 1
      %s175 = scalar_select %p172, %s173, %s174
      %p178 = pneg %p172
      %p179 = scmp.eq.s32.totalorder %s22, 1
      %p180 = por %p178, %p179
      %p181 = scmp.ne.s32.totalorder %s173, %s176
      %p182 = scmp.eq.s32.totalorder %s22, 0
      %p183 = por %p181, %p182
      %p184 = scmp.ne.s32.totalorder %s173, %s176
      %p185 = scmp.eq.s32.totalorder %s27, 1
      %p186 = por %p184, %p185
      %p187 = scmp.ne.s32.totalorder %s176, %s177
      %p188 = scmp.eq.s32.totalorder %s27, 0
      %p189 = por %p187, %p188
      %p190 = scmp.ne.s32.totalorder %s176, %s177
      %p191 = scmp.eq.s32.totalorder %s28, 1
      %p192 = por %p190, %p191
      %p194 = scmp.ne.s32.totalorder %s177, %s193
      %p195 = scmp.eq.s32.totalorder %s28, 0
      %p196 = por %p194, %p195
      %s197 = ssub.s32 %s22, %s29
      %p198 = scmp.eq.s32.totalorder %s197, 0
      %s200 = sadd.s32 %s199, 1
      %s201 = scalar_select %p198, %s199, %s200
      %p204 = pneg %p198
      %p205 = scmp.eq.s32.totalorder %s22, 1
      %p206 = por %p204, %p205
      %p207 = scmp.ne.s32.totalorder %s199, %s202
      %p208 = scmp.eq.s32.totalorder %s22, 0
      %p209 = por %p207, %p208
      %p210 = scmp.ne.s32.totalorder %s199, %s202
      %p211 = scmp.eq.s32.totalorder %s27, 1
      %p212 = por %p210, %p211
      %p213 = scmp.ne.s32.totalorder %s202, %s203
      %p214 = scmp.eq.s32.totalorder %s27, 0
      %p215 = por %p213, %p214
      %p216 = scmp.ne.s32.totalorder %s202, %s203
      %p217 = scmp.eq.s32.totalorder %s28, 1
      %p218 = por %p216, %p217
      %p220 = scmp.ne.s32.totalorder %s203, %s219
      %p221 = scmp.eq.s32.totalorder %s28, 0
      %p222 = por %p220, %p221
      %s223 = ssub.s32 %s22, %s29
      %p224 = scmp.eq.s32.totalorder %s223, 0
      %s226 = sadd.s32 %s225, 1
      %s227 = scalar_select %p224, %s225, %s226
      %p230 = pneg %p224
      %p231 = scmp.eq.s32.totalorder %s22, 1
      %p232 = por %p230, %p231
      %p233 = scmp.ne.s32.totalorder %s225, %s228
      %p234 = scmp.eq.s32.totalorder %s22, 0
      %p235 = por %p233, %p234
      %p236 = scmp.ne.s32.totalorder %s225, %s228
      %p237 = scmp.eq.s32.totalorder %s27, 1
      %p238 = por %p236, %p237
      %p239 = scmp.ne.s32.totalorder %s228, %s229
      %p240 = scmp.eq.s32.totalorder %s27, 0
      %p241 = por %p239, %p240
      %p242 = scmp.ne.s32.totalorder %s228, %s229
      %p243 = scmp.eq.s32.totalorder %s28, 1
      %p244 = por %p242, %p243
      %p246 = scmp.ne.s32.totalorder %s229, %s245
      %p247 = scmp.eq.s32.totalorder %s28, 0
      %p248 = por %p246, %p247
      %p249 = scmp.le.s32.totalorder 1, %s22
      %p250 = scmp.lt.s32.totalorder %s22, 3
      %p251 = pnand %p249, %p250
      %p252 = pneg %p251
      // Predicated region
      $region9: #{tpu_custom_call.1} parent=5 // pred_check
        _
      $region10: #{tpu_custom_call.1} parent=5 // pred_check_branch
        %254 = sbr.rel (%p251) target = $region12
      $region11: #{tpu_custom_call.1} parent=5 // pred_region
        %s255 = ssub.s32 %s22, 1
        // Predicated region
        $region13: #{tpu_custom_call.1} parent=11 // pred_check
          %p256 = pneg %p69
        $region14: #{tpu_custom_call.1} parent=11 // pred_check_branch
          %258 = sbr.rel (%p256) target = $region16
        $region15: #{tpu_custom_call.1} parent=11 // pred_region
          %s260 = ssub.s32 512, 512
          %261 = vsyncadd [#allocation3], %s260
          %s262 = sshll.u32 [#allocation2], 4
          %s263 = int_to_ptr.vmem [resolvable:$true] %s262
          %268 = dma.hbm_to_vmem [thread:$0]  %s1, 512, %s263, [#allocation3], 128, 128, 8
        $region16: #{tpu_custom_call.1} parent=11 // pred_fallthru
          _
        // Predicated region
        $region17: #{tpu_custom_call.1} parent=11 // pred_check
          %p269 = pneg %p90
        $region18: #{tpu_custom_call.1} parent=11 // pred_check_branch
          %271 = sbr.rel (%p269) target = $region20
        $region19: #{tpu_custom_call.1} parent=11 // pred_region
          _
        $region20: #{tpu_custom_call.1} parent=11 // pred_fallthru
          _
        // Predicated region
        $region21: #{tpu_custom_call.1} parent=11 // pred_check
          %p272 = pneg %p111
        $region22: #{tpu_custom_call.1} parent=11 // pred_check_branch
          %274 = sbr.rel (%p272) target = $region24
        $region23: #{tpu_custom_call.1} parent=11 // pred_region
          _
        $region24: #{tpu_custom_call.1} parent=11 // pred_fallthru
          _
      $region12: #{tpu_custom_call.1} parent=5 // pred_fallthru
        _
      %p275 = scmp.lt.s32.totalorder %s22, 2
      // Predicated region
      $region25: #{tpu_custom_call.1} parent=5 // pred_check
        %p276 = pneg %p275
      $region26: #{tpu_custom_call.1} parent=5 // pred_check_branch
        %278 = sbr.rel (%p276) target = $region28
      $region27: #{tpu_custom_call.1} parent=5 // pred_region
        // Predicated region
        $region29: #{tpu_custom_call.1} parent=27 // pred_check
          %p279 = pneg %p42
        $region30: #{tpu_custom_call.1} parent=27 // pred_check_branch
          %281 = sbr.rel (%p279) target = $region32
        $region31: #{tpu_custom_call.1} parent=27 // pred_region
          %p282 = scmp.lt.s32.totalorder %s22, 1
          %s283 = scalar_select %p282, %s22, 1
          %s284 = smul.addr %s283, 8
          %s285 = scalar_lea.vmem %s0, %s284
        $region32: #{tpu_custom_call.1} parent=27 // pred_fallthru
          _
        // Predicated region
        $region33: #{tpu_custom_call.1} parent=27 // pred_check
          %p286 = pneg %p131
        $region34: #{tpu_custom_call.1} parent=27 // pred_check_branch
          %288 = sbr.rel (%p286) target = $region36
        $region35: #{tpu_custom_call.1} parent=27 // pred_region
          %s289 = sand.u32 %s22, 1
          %s290 = scalar_lea.sflag [#allocation6], %s289
          %s291 = sand.u32 %s121, 1
          %s292 = smul.addr %s291, 64
          %s293 = scalar_lea.vmem [#allocation5], %s292
          %s294 = smul.u32 8, %s22
          %s296 = ssub.s32 1024, 1024
          %297 = vsyncadd %s290, %s296
          %s298 = smul.addr %s294, 128
          %s299 = scalar_lea.hbm %s4, %s298
          %s300 = sshll.u32 %s293, 4
          %s301 = int_to_ptr.vmem [resolvable:$true] %s300
          %306 = dma.hbm_to_vmem [thread:$0]  %s299, 1024, %s301, %s290, 128, 128, 8
        $region36: #{tpu_custom_call.1} parent=27 // pred_fallthru
          _
        // Predicated region
        $region37: #{tpu_custom_call.1} parent=27 // pred_check
          %p307 = pneg %p157
        $region38: #{tpu_custom_call.1} parent=27 // pred_check_branch
          %309 = sbr.rel (%p307) target = $region40
        $region39: #{tpu_custom_call.1} parent=27 // pred_region
          %s310 = sand.u32 %s22, 1
          %s311 = scalar_lea.sflag [#allocation6], %s310
          %s312 = sand.u32 %s147, 1
          %s313 = smul.addr %s312, 64
          %s314 = scalar_lea.vmem [#allocation7], %s313
          %s315 = smul.u32 8, %s22
          %s317 = ssub.s32 1024, 1024
          %318 = vsyncadd %s311, %s317
          %s319 = smul.addr %s315, 128
          %s320 = scalar_lea.hbm %s5, %s319
          %s321 = sshll.u32 %s314, 4
          %s322 = int_to_ptr.vmem [resolvable:$true] %s321
          %327 = dma.hbm_to_vmem [thread:$0]  %s320, 1024, %s322, %s311, 128, 128, 8
        $region40: #{tpu_custom_call.1} parent=27 // pred_fallthru
          _
        // Predicated region
        $region41: #{tpu_custom_call.1} parent=27 // pred_check
          %p328 = pneg %p183
        $region42: #{tpu_custom_call.1} parent=27 // pred_check_branch
          %330 = sbr.rel (%p328) target = $region44
        $region43: #{tpu_custom_call.1} parent=27 // pred_region
          %p331 = scmp.lt.s32.totalorder %s22, 1
          %s332 = scalar_select %p331, %s22, 1
          %s333 = smul.addr %s332, 8
          %s334 = scalar_lea.vmem %s6, %s333
        $region44: #{tpu_custom_call.1} parent=27 // pred_fallthru
          _
      $region28: #{tpu_custom_call.1} parent=5 // pred_fallthru
        _
      %p335 = scmp.le.s32.totalorder 1, %s22
      %p336 = scmp.lt.s32.totalorder %s22, 3
      %p337 = pnand %p335, %p336
      %p338 = pneg %p337
      // Predicated region
      $region45: #{tpu_custom_call.1} parent=5 // pred_check
        _
      $region46: #{tpu_custom_call.1} parent=5 // pred_check_branch
        %340 = sbr.rel (%p337) target = $region48
      $region47: #{tpu_custom_call.1} parent=5 // pred_region
        %s341 = ssub.s32 %s22, 1
        // Predicated region
        $region49: #{tpu_custom_call.1} parent=47 // pred_check
          %p342 = pneg %p69
        $region50: #{tpu_custom_call.1} parent=47 // pred_check_branch
          %344 = sbr.rel (%p342) target = $region52
        $region51: #{tpu_custom_call.1} parent=47 // pred_region
          %345 = dma.done [#allocation3], 512
        $region52: #{tpu_custom_call.1} parent=47 // pred_fallthru
          _
        %s346 = sand.u32 %s27, 1
        %s347 = scalar_lea.sflag [#allocation6], %s346
        %s348 = sand.u32 %s124, 1
        %s349 = smul.addr %s348, 64
        %s350 = scalar_lea.vmem [#allocation5], %s349
        // Predicated region
        $region53: #{tpu_custom_call.1} parent=47 // pred_check
          %p351 = pneg %p137
        $region54: #{tpu_custom_call.1} parent=47 // pred_check_branch
          %353 = sbr.rel (%p351) target = $region56
        $region55: #{tpu_custom_call.1} parent=47 // pred_region
          %354 = dma.done %s347, 1024
        $region56: #{tpu_custom_call.1} parent=47 // pred_fallthru
          _
        %s355 = sand.u32 %s27, 1
        %s356 = scalar_lea.sflag [#allocation6], %s355
        %s357 = sand.u32 %s150, 1
        %s358 = smul.addr %s357, 64
        %s359 = scalar_lea.vmem [#allocation7], %s358
        // Predicated region
        $region57: #{tpu_custom_call.1} parent=47 // pred_check
          %p360 = pneg %p163
        $region58: #{tpu_custom_call.1} parent=47 // pred_check_branch
          %362 = sbr.rel (%p360) target = $region60
        $region59: #{tpu_custom_call.1} parent=47 // pred_region
          %363 = dma.done %s356, 1024
        $region60: #{tpu_custom_call.1} parent=47 // pred_fallthru
          _
        %p364 = scmp.lt.s32.totalorder %s27, 1
        %s365 = scalar_select %p364, %s27, 1
        %s366 = smul.addr %s365, 8
        %s367 = scalar_lea.vmem %s0, %s366
        %p368 = pneg %p48
        %p369 = pneg %p45
        %p370 = pneg %p69
        %p371 = pneg %p66
        %p372 = pneg %p90
        %p373 = pneg %p87
        %p374 = pneg %p111
        %p375 = pneg %p108
        %s376 = sand.u32 %s27, 1
        %s377 = scalar_lea.sflag [#allocation6], %s376
        %s378 = sand.u32 %s124, 1
        %s379 = smul.addr %s378, 64
        %s380 = scalar_lea.vmem [#allocation5], %s379
        %p381 = pneg %p137
        %p382 = pneg %p134
        %s383 = sand.u32 %s27, 1
        %s384 = scalar_lea.sflag [#allocation6], %s383
        %s385 = sand.u32 %s150, 1
        %s386 = smul.addr %s385, 64
        %s387 = scalar_lea.vmem [#allocation7], %s386
        %p388 = pneg %p163
        %p389 = pneg %p160
        %p390 = scmp.lt.s32.totalorder %s27, 1
        %s391 = scalar_select %p390, %s27, 1
        %s392 = smul.addr %s391, 8
        %s393 = scalar_lea.vmem %s6, %s392
        %p394 = pneg %p189
        %p395 = pneg %p186
        %p396 = pneg %p215
        %p397 = pneg %p212
        %s398 = sand.u32 %s202, 1
        %s399 = scalar_lea.sflag [#allocation4], %s398
        %s400 = sand.u32 %s202, 1
        %s401 = smul.addr %s400, 8
        %s402 = scalar_lea.vmem [#allocation8], %s401
        %p403 = pneg %p241
        %p404 = pneg %p238
        %p405 = scmp.lt.s32.totalorder %s27, 1
        %s406 = scalar_select %p405, %s27, 1
        %s407 = smul.addr %s406, 8
        %s408 = scalar_lea.vmem %s8, %s407
        %p409 = scmp.lt.s32.totalorder %s27, 1
        %s410 = scalar_select %p409, %s27, 1
        %s411 = smul.addr %s410, 8
        %s412 = scalar_lea.vmem %s0, %s411
        %s413 = smul.u32 8, %s27
        %s414 = smul.u32 8, %s27
        %p415 = scmp.lt.s32.totalorder %s27, 1
        %s416 = scalar_select %p415, %s27, 1
        %s417 = smul.addr %s416, 8
        %s418 = scalar_lea.vmem %s6, %s417
        %p419 = scmp.lt.s32.totalorder %s27, 1
        %s420 = scalar_select %p419, %s27, 1
        %s421 = smul.addr %s420, 8
        %s422 = scalar_lea.vmem %s8, %s421
        %v423 = vld [vmem:[%s412] sm:$0xff]
        %v424 = vld [vmem:[#allocation2] sm:$0xff]
        %v425 = vld [vmem:[#allocation2 + $0x8] sm:$0xff]
        %v426 = vld [vmem:[#allocation2 + $0x10] sm:$0xff]
        %v427 = vld [vmem:[#allocation2 + $0x18] sm:$0xff]
        %v428 = vld [vmem:[%s2] sm:$0x1]
        %v430 = vlaneseq
        %v431 = vshrl.u32 %v430, 7
        %v432 = vsub.s32 0, %v431
        %v433 = vrot.slane %v428, %v432
        %vm435 = vcmask 261120
        %v437 = vsel %vm435, %v423, 0
        %439 = vmatprep.subr.mxu0 0.0
        %440 = vmatpush1.msra.mxu0 0.0
        %441 = vmatprep.subr.mxu0 0.0
        %442 = vmatpush1.msra.mxu0 0.0
        %443 = vmatprep.subr.mxu0 0.0
        %444 = vmatpush1.msra.mxu0 0.0
        %445 = vmatprep.subr.mxu0 0.0
        %446 = vmatpush1.msra.mxu0 0.0
        %447 = vmatprep.subr.mxu0 0.0
        %448 = vmatpush1.msra.mxu0 0.0
        %449 = vmatprep.subr.mxu0 0.0
        %450 = vmatpush1.msra.mxu0 0.0
        %451 = vmatprep.subr.mxu0 0.0
        %452 = vmatpush1.msra.mxu0 0.0
        %453 = vmatprep.subr.mxu0 0.0
        %454 = vmatpush1.msra.mxu0 0.0
        %455 = vmatprep.subr.mxu0 0.0
        %456 = vmatpush1.msra.mxu0 0.0
        %457 = vmatprep.subr.mxu0 0.0
        %458 = vmatpush1.msra.mxu0 0.0
        %459 = vmatprep.subr.mxu0 0.0
        %460 = vmatpush1.msra.mxu0 0.0
        %461 = vmatprep.subr.mxu0 0.0
        %462 = vmatpush1.msra.mxu0 0.0
        %463 = vmatprep.subr.mxu0 0.0
        %464 = vmatpush1.msra.mxu0 %v427
        %465 = vmatprep.subr.mxu0 0.0
        %466 = vmatpush1.msra.mxu0 %v426
        %467 = vmatprep.subr.mxu0 0.0
        %468 = vmatpush1.msra.mxu0 %v425
        %469 = vmatprep.subr.mxu0 0.0
        %470 = vmatpush1.msra.mxu0 %v424
        %471 = vmatprep.subr.mxu0 0.0
        %472 = vmatpush2.msra.mxu0 0.0
        %473 = vmatprep.subr.mxu0 0.0
        %474 = vmatpush2.msra.mxu0 0.0
        %475 = vmatprep.subr.mxu0 0.0
        %476 = vmatpush2.msra.mxu0 0.0
        %477 = vmatprep.subr.mxu0 0.0
        %478 = vmatpush2.msra.mxu0 0.0
        %479 = vmatprep.subr.mxu0 0.0
        %480 = vmatpush2.msra.mxu0 0.0
        %481 = vmatprep.subr.mxu0 0.0
        %482 = vmatpush2.msra.mxu0 0.0
        %483 = vmatprep.subr.mxu0 0.0
        %484 = vmatpush2.msra.mxu0 0.0
        %485 = vmatprep.subr.mxu0 0.0
        %486 = vmatpush2.msra.mxu0 0.0
        %487 = vmatprep.subr.mxu0 0.0
        %488 = vmatpush2.msra.mxu0 0.0
        %489 = vmatprep.subr.mxu0 0.0
        %490 = vmatpush2.msra.mxu0 0.0
        %491 = vmatprep.subr.mxu0 0.0
        %492 = vmatpush2.msra.mxu0 0.0
        %493 = vmatprep.subr.mxu0 0.0
        %494 = vmatpush2.msra.mxu0 0.0
        %495 = vmatprep.subr.mxu0 0.0
        %496 = vmatpush2.msra.mxu0 0.0
        %497 = vmatprep.subr.mxu0 0.0
        %498 = vmatpush2.msra.mxu0 0.0
        %499 = vmatprep.subr.mxu0 0.0
        %500 = vmatpush2.msra.mxu0 0.0
        %501 = vmatprep.subr.mxu0 0.0
        %502 = vmatpush2.msra.mxu0 0.0
        %503 = vmatprep.mubr.f32.mxu0 0.0
        %504 = vmatmul.mubr.f32.gmra.mxu0 %v437
        %v505 = vpop.f32.mrf.mxu0
        %v506 = vadd.f32 %v433, %v505
        %v507 = vpop.f32.mrf.mxu0
        %508 = vdwg.mxu0
        %v509 = vld [vmem:[%s359] sm:$0xff]
        %v510 = vld [vmem:[%s359 + $0x8] sm:$0xff]
        %v511 = vld [vmem:[%s359 + $0x10] sm:$0xff]
        %v512 = vld [vmem:[%s359 + $0x18] sm:$0xff]
        %v513 = vld [vmem:[%s359 + $0x20] sm:$0xff]
        %v514 = vld [vmem:[%s359 + $0x28] sm:$0xff]
        %v515 = vld [vmem:[%s359 + $0x30] sm:$0xff]
        %v516 = vld [vmem:[%s359 + $0x38] sm:$0xff]
        %v518 = vcombine.high %v506, %v506
        %v520 = vunpack.c.l.s4 1966171168
        %v521 = vunpack.c.0.s8 %v520
        %v522 = vlaneseq
        %v523 = vshrl.u32 %v522, 7
        %v524 = vsub.s32 %v521, %v523
        %v525 = vrot.slane %v506, %v524
        %v527 = vunpack.c.l.s4 1966171168
        %v528 = vunpack.c.0.s8 %v527
        %v529 = vlaneseq
        %v530 = vshrl.u32 %v529, 7
        %v531 = vsub.s32 %v528, %v530
        %v532 = vrot.slane %v518, %v531
        %v533 = vcombine.high %v525, %v525
        %v534 = vcombine.high %v532, %v532
        %v536 = vunpack.c.l.s4 1966171168
        %v537 = vunpack.c.0.s8 %v536
        %v538 = vlaneseq
        %v539 = vshrl.u32 %v538, 7
        %v540 = vsub.s32 %v537, %v539
        %v541 = vrot.slane %v525, %v540
        %v543 = vunpack.c.l.s4 1966171168
        %v544 = vunpack.c.0.s8 %v543
        %v545 = vlaneseq
        %v546 = vshrl.u32 %v545, 7
        %v547 = vsub.s32 %v544, %v546
        %v548 = vrot.slane %v532, %v547
        %v550 = vunpack.c.l.s4 1966171168
        %v551 = vunpack.c.0.s8 %v550
        %v552 = vlaneseq
        %v553 = vshrl.u32 %v552, 7
        %v554 = vsub.s32 %v551, %v553
        %v555 = vrot.slane %v533, %v554
        %v557 = vunpack.c.l.s4 1966171168
        %v558 = vunpack.c.0.s8 %v557
        %v559 = vlaneseq
        %v560 = vshrl.u32 %v559, 7
        %v561 = vsub.s32 %v558, %v560
        %v562 = vrot.slane %v534, %v561
        %v563 = vcombine.high %v541, %v541
        %v564 = vcombine.high %v548, %v548
        %v565 = vcombine.high %v555, %v555
        %v566 = vcombine.high %v562, %v562
        %v567 = vlaneseq
        %v568 = vshrl.u32 %v567, 7
        %v569 = vsub.s32 0, %v568
        %v570 = vrot.slane %v541, %v569
        %v571 = vlaneseq
        %v572 = vshrl.u32 %v571, 7
        %v573 = vsub.s32 0, %v572
        %v574 = vrot.slane %v555, %v573
        %v575 = vlaneseq
        %v576 = vshrl.u32 %v575, 7
        %v577 = vsub.s32 0, %v576
        %v578 = vrot.slane %v563, %v577
        %v579 = vlaneseq
        %v580 = vshrl.u32 %v579, 7
        %v581 = vsub.s32 0, %v580
        %v582 = vrot.slane %v565, %v581
        %v583 = vlaneseq
        %v584 = vshrl.u32 %v583, 7
        %v585 = vsub.s32 0, %v584
        %v586 = vrot.slane %v548, %v585
        %v587 = vlaneseq
        %v588 = vshrl.u32 %v587, 7
        %v589 = vsub.s32 0, %v588
        %v590 = vrot.slane %v562, %v589
        %v591 = vlaneseq
        %v592 = vshrl.u32 %v591, 7
        %v593 = vsub.s32 0, %v592
        %v594 = vrot.slane %v564, %v593
        %v595 = vlaneseq
        %v596 = vshrl.u32 %v595, 7
        %v597 = vsub.s32 0, %v596
        %v598 = vrot.slane %v566, %v597
        %v607 = vadd.f32 %v509, %v570
        %v608 = vadd.f32 %v510, %v574
        %v609 = vadd.f32 %v511, %v578
        %v610 = vadd.f32 %v512, %v582
        %v611 = vadd.f32 %v513, %v586
        %v612 = vadd.f32 %v514, %v590
        %v613 = vadd.f32 %v515, %v594
        %v614 = vadd.f32 %v516, %v598
        %v615 = vtanh.pop %v607
        %v616 = vtanh.pop %v608
        %v617 = vtanh.pop %v609
        %v618 = vtanh.pop %v610
        %v619 = vtanh.pop %v611
        %v620 = vtanh.pop %v612
        %v621 = vtanh.pop %v613
        %v622 = vtanh.pop %v614
        %v623 = vld [vmem:[%s3] sm:$0x1]
        %v625 = vlaneseq
        %v626 = vshrl.u32 %v625, 7
        %v627 = vsub.s32 0, %v626
        %v628 = vrot.slane %v623, %v627
        %v630 = vmul.f32 %v615, %v628
        %v631 = vmul.f32 %v616, %v628
        %v632 = vmul.f32 %v617, %v628
        %v633 = vmul.f32 %v618, %v628
        %v634 = vmul.f32 %v619, %v628
        %v635 = vmul.f32 %v620, %v628
        %v636 = vmul.f32 %v621, %v628
        %v637 = vmul.f32 %v622, %v628
        %v638 = vsel %vm435, %v630, 0.0
        %639 = vadd.xlane.f32.xlu0 %v638
        %v640 = vpop.xlane.xlu0 %639
        %v641 = vsel %vm435, %v631, 0.0
        %642 = vadd.xlane.f32.xlu0 %v641
        %v643 = vpop.xlane.xlu0 %642
        %v644 = vsel %vm435, %v632, 0.0
        %645 = vadd.xlane.f32.xlu0 %v644
        %v646 = vpop.xlane.xlu0 %645
        %v647 = vsel %vm435, %v633, 0.0
        %648 = vadd.xlane.f32.xlu0 %v647
        %v649 = vpop.xlane.xlu0 %648
        %v650 = vsel %vm435, %v634, 0.0
        %651 = vadd.xlane.f32.xlu0 %v650
        %v652 = vpop.xlane.xlu0 %651
        %v653 = vsel %vm435, %v635, 0.0
        %654 = vadd.xlane.f32.xlu0 %v653
        %v655 = vpop.xlane.xlu0 %654
        %v656 = vsel %vm435, %v636, 0.0
        %657 = vadd.xlane.f32.xlu0 %v656
        %v658 = vpop.xlane.xlu0 %657
        %v659 = vsel %vm435, %v637, 0.0
        %660 = vadd.xlane.f32.xlu0 %v659
        %v661 = vpop.xlane.xlu0 %660
        %v662 = vld [vmem:[%s418] sm:$0xff]
        %v671 = vlaneseq
        %v672 = vand.u32 %v671, 127
        %v673 = vlaneseq
        %v674 = vshrl.u32 %v673, 7
        %v675 = vsub.s32 %v672, %v674
        %v676 = vrot.slane %v640, %v675
        %v677 = vlaneseq
        %v678 = vshrl.u32 %v677, 7
        %v679 = vsub.s32 %v672, %v678
        %v680 = vrot.slane %v643, %v679
        %v681 = vlaneseq
        %v682 = vshrl.u32 %v681, 7
        %v683 = vsub.s32 %v672, %v682
        %v684 = vrot.slane %v646, %v683
        %v685 = vlaneseq
        %v686 = vshrl.u32 %v685, 7
        %v687 = vsub.s32 %v672, %v686
        %v688 = vrot.slane %v649, %v687
        %v689 = vlaneseq
        %v690 = vshrl.u32 %v689, 7
        %v691 = vsub.s32 %v672, %v690
        %v692 = vrot.slane %v652, %v691
        %v693 = vlaneseq
        %v694 = vshrl.u32 %v693, 7
        %v695 = vsub.s32 %v672, %v694
        %v696 = vrot.slane %v655, %v695
        %v697 = vlaneseq
        %v698 = vshrl.u32 %v697, 7
        %v699 = vsub.s32 %v672, %v698
        %v700 = vrot.slane %v658, %v699
        %v701 = vlaneseq
        %v702 = vshrl.u32 %v701, 7
        %v703 = vsub.s32 %v672, %v702
        %v704 = vrot.slane %v661, %v703
        %vm705 = vcmask 1041409
        %v706 = vsel %vm705, %v680, %v676
        %vm707 = vcmask 1042434
        %v708 = vsel %vm707, %v684, %v706
        %vm709 = vcmask 1043459
        %v710 = vsel %vm709, %v688, %v708
        %vm711 = vcmask 1044484
        %v712 = vsel %vm711, %v692, %v710
        %vm713 = vcmask 1045509
        %v714 = vsel %vm713, %v696, %v712
        %vm715 = vcmask 1046534
        %v716 = vsel %vm715, %v700, %v714
        %vm717 = vcmask 1047559
        %v718 = vsel %vm717, %v704, %v716
        %vm720 = vcmask 64512
        %v721 = vsel %vm720, %v718, -inf
        %722 = vmax.xlane.f32.xlu0 %v721
        %v723 = vpop.xlane.xlu0 %722
        %v725 = vlaneseq
        %v726 = vshrl.u32 %v725, 7
        %v727 = vsub.s32 0, %v726
        %v728 = vrot.slane %v723, %v727
        %v729 = vlaneseq
        %v730 = vshrl.u32 %v729, 7
        %v731 = vsub.s32 1, %v730
        %v732 = vrot.slane %v723, %v731
        %v733 = vlaneseq
        %v734 = vshrl.u32 %v733, 7
        %v735 = vsub.s32 2, %v734
        %v736 = vrot.slane %v723, %v735
        %v737 = vlaneseq
        %v738 = vshrl.u32 %v737, 7
        %v739 = vsub.s32 3, %v738
        %v740 = vrot.slane %v723, %v739
        %v741 = vlaneseq
        %v742 = vshrl.u32 %v741, 7
        %v743 = vsub.s32 4, %v742
        %v744 = vrot.slane %v723, %v743
        %v745 = vlaneseq
        %v746 = vshrl.u32 %v745, 7
        %v747 = vsub.s32 5, %v746
        %v748 = vrot.slane %v723, %v747
        %v749 = vlaneseq
        %v750 = vshrl.u32 %v749, 7
        %v751 = vsub.s32 6, %v750
        %v752 = vrot.slane %v723, %v751
        %v753 = vlaneseq
        %v754 = vshrl.u32 %v753, 7
        %v755 = vsub.s32 7, %v754
        %v756 = vrot.slane %v723, %v755
        %v765 = vsub.f32 %v640, %v728
        %v766 = vsub.f32 %v643, %v732
        %v767 = vsub.f32 %v646, %v736
        %v768 = vsub.f32 %v649, %v740
        %v769 = vsub.f32 %v652, %v744
        %v770 = vsub.f32 %v655, %v748
        %v771 = vsub.f32 %v658, %v752
        %v772 = vsub.f32 %v661, %v756
        %v773 = vmul.f32 %v765, 1.442695
        %v774 = vpow.pop %v773
        %v775 = vmul.f32 %v766, 1.442695
        %v776 = vpow.pop %v775
        %v777 = vmul.f32 %v767, 1.442695
        %v778 = vpow.pop %v777
        %v779 = vmul.f32 %v768, 1.442695
        %v780 = vpow.pop %v779
        %v781 = vmul.f32 %v769, 1.442695
        %v782 = vpow.pop %v781
        %v783 = vmul.f32 %v770, 1.442695
        %v784 = vpow.pop %v783
        %v785 = vmul.f32 %v771, 1.442695
        %v786 = vpow.pop %v785
        %v787 = vmul.f32 %v772, 1.442695
        %v788 = vpow.pop %v787
        %v790 = vlaneseq
        %v791 = vshrl.u32 %v790, 7
        %v792 = vsub.s32 0, %v791
        %v793 = vrot.slane %v662, %v792
        %795 = vbcast.lane.b32.xlu0 %v793, 256
        %v796 = vpop.permute.xlu0 %795
        %v797 = vlaneseq
        %v798 = vshrl.u32 %v797, 7
        %v799 = vsub.s32 1, %v798
        %v800 = vrot.slane %v662, %v799
        %802 = vbcast.lane.b32.xlu0 %v800, 256
        %v803 = vpop.permute.xlu0 %802
        %v804 = vlaneseq
        %v805 = vshrl.u32 %v804, 7
        %v806 = vsub.s32 2, %v805
        %v807 = vrot.slane %v662, %v806
        %809 = vbcast.lane.b32.xlu0 %v807, 256
        %v810 = vpop.permute.xlu0 %809
        %v811 = vlaneseq
        %v812 = vshrl.u32 %v811, 7
        %v813 = vsub.s32 3, %v812
        %v814 = vrot.slane %v662, %v813
        %816 = vbcast.lane.b32.xlu0 %v814, 256
        %v817 = vpop.permute.xlu0 %816
        %v818 = vlaneseq
        %v819 = vshrl.u32 %v818, 7
        %v820 = vsub.s32 4, %v819
        %v821 = vrot.slane %v662, %v820
        %823 = vbcast.lane.b32.xlu0 %v821, 256
        %v824 = vpop.permute.xlu0 %823
        %v825 = vlaneseq
        %v826 = vshrl.u32 %v825, 7
        %v827 = vsub.s32 5, %v826
        %v828 = vrot.slane %v662, %v827
        %830 = vbcast.lane.b32.xlu0 %v828, 256
        %v831 = vpop.permute.xlu0 %830
        %v832 = vlaneseq
        %v833 = vshrl.u32 %v832, 7
        %v834 = vsub.s32 6, %v833
        %v835 = vrot.slane %v662, %v834
        %837 = vbcast.lane.b32.xlu0 %v835, 256
        %v838 = vpop.permute.xlu0 %837
        %v839 = vlaneseq
        %v840 = vshrl.u32 %v839, 7
        %v841 = vsub.s32 7, %v840
        %v842 = vrot.slane %v662, %v841
        %844 = vbcast.lane.b32.xlu0 %v842, 256
        %v845 = vpop.permute.xlu0 %844
        %v854 = vmul.f32 %v774, %v796
        %v855 = vmul.f32 %v776, %v803
        %v856 = vmul.f32 %v778, %v810
        %v857 = vmul.f32 %v780, %v817
        %v858 = vmul.f32 %v782, %v824
        %v859 = vmul.f32 %v784, %v831
        %v860 = vmul.f32 %v786, %v838
        %v861 = vmul.f32 %v788, %v845
        %870 = vset.pattern.permute.xlu0 0
        %871 = vperm.xlu0 %870, %v854
        %v872 = vpop.permute.xlu0 %871
        %873 = vset.pattern.permute.xlu0 0
        %874 = vperm.xlu0 %873, %v855
        %v875 = vpop.permute.xlu0 %874
        %876 = vset.pattern.permute.xlu0 0
        %877 = vperm.xlu0 %876, %v856
        %v878 = vpop.permute.xlu0 %877
        %879 = vset.pattern.permute.xlu0 0
        %880 = vperm.xlu0 %879, %v857
        %v881 = vpop.permute.xlu0 %880
        %882 = vset.pattern.permute.xlu0 0
        %883 = vperm.xlu0 %882, %v858
        %v884 = vpop.permute.xlu0 %883
        %885 = vset.pattern.permute.xlu0 0
        %886 = vperm.xlu0 %885, %v859
        %v887 = vpop.permute.xlu0 %886
        %888 = vset.pattern.permute.xlu0 0
        %889 = vperm.xlu0 %888, %v860
        %v890 = vpop.permute.xlu0 %889
        %891 = vset.pattern.permute.xlu0 0
        %892 = vperm.xlu0 %891, %v861
        %v893 = vpop.permute.xlu0 %892
        %v894 = vlaneseq
        %v895 = vshrl.u32 %v894, 7
        %v896 = vsub.s32 %v672, %v895
        %v897 = vrot.slane %v872, %v896
        %v898 = vlaneseq
        %v899 = vshrl.u32 %v898, 7
        %v900 = vsub.s32 %v672, %v899
        %v901 = vrot.slane %v875, %v900
        %v902 = vlaneseq
        %v903 = vshrl.u32 %v902, 7
        %v904 = vsub.s32 %v672, %v903
        %v905 = vrot.slane %v878, %v904
        %v906 = vlaneseq
        %v907 = vshrl.u32 %v906, 7
        %v908 = vsub.s32 %v672, %v907
        %v909 = vrot.slane %v881, %v908
        %v910 = vlaneseq
        %v911 = vshrl.u32 %v910, 7
        %v912 = vsub.s32 %v672, %v911
        %v913 = vrot.slane %v884, %v912
        %v914 = vlaneseq
        %v915 = vshrl.u32 %v914, 7
        %v916 = vsub.s32 %v672, %v915
        %v917 = vrot.slane %v887, %v916
        %v918 = vlaneseq
        %v919 = vshrl.u32 %v918, 7
        %v920 = vsub.s32 %v672, %v919
        %v921 = vrot.slane %v890, %v920
        %v922 = vlaneseq
        %v923 = vshrl.u32 %v922, 7
        %v924 = vsub.s32 %v672, %v923
        %v925 = vrot.slane %v893, %v924
        %v926 = vsel %vm705, %v901, %v897
        %v927 = vsel %vm707, %v905, %v926
        %v928 = vsel %vm709, %v909, %v927
        %v929 = vsel %vm711, %v913, %v928
        %v930 = vsel %vm713, %v917, %v929
        %v931 = vsel %vm715, %v921, %v930
        %v932 = vsel %vm717, %v925, %v931
        %v934 = vsel %vm720, %v932, 0.0
        %935 = vadd.xlane.f32.xlu0 %v934
        %v936 = vpop.xlane.xlu0 %935
        %v938 = vlaneseq
        %v939 = vshrl.u32 %v938, 7
        %v940 = vsub.s32 0, %v939
        %v941 = vrot.slane %v936, %v940
        %v942 = vlaneseq
        %v943 = vshrl.u32 %v942, 7
        %v944 = vsub.s32 1, %v943
        %v945 = vrot.slane %v936, %v944
        %v946 = vlaneseq
        %v947 = vshrl.u32 %v946, 7
        %v948 = vsub.s32 2, %v947
        %v949 = vrot.slane %v936, %v948
        %v950 = vlaneseq
        %v951 = vshrl.u32 %v950, 7
        %v952 = vsub.s32 3, %v951
        %v953 = vrot.slane %v936, %v952
        %v954 = vlaneseq
        %v955 = vshrl.u32 %v954, 7
        %v956 = vsub.s32 4, %v955
        %v957 = vrot.slane %v936, %v956
        %v958 = vlaneseq
        %v959 = vshrl.u32 %v958, 7
        %v960 = vsub.s32 5, %v959
        %v961 = vrot.slane %v936, %v960
        %v962 = vlaneseq
        %v963 = vshrl.u32 %v962, 7
        %v964 = vsub.s32 6, %v963
        %v965 = vrot.slane %v936, %v964
        %v966 = vlaneseq
        %v967 = vshrl.u32 %v966, 7
        %v968 = vsub.s32 7, %v967
        %v969 = vrot.slane %v936, %v968
        %v978 = vrcp.pop %v941
        %v979 = vmul.f32 %v854, %v978
        %v980 = vrcp.pop %v945
        %v981 = vmul.f32 %v855, %v980
        %v982 = vrcp.pop %v949
        %v983 = vmul.f32 %v856, %v982
        %v984 = vrcp.pop %v953
        %v985 = vmul.f32 %v857, %v984
        %v986 = vrcp.pop %v957
        %v987 = vmul.f32 %v858, %v986
        %v988 = vrcp.pop %v961
        %v989 = vmul.f32 %v859, %v988
        %v990 = vrcp.pop %v965
        %v991 = vmul.f32 %v860, %v990
        %v992 = vrcp.pop %v969
        %v993 = vmul.f32 %v861, %v992
        %1002 = vset.pattern.permute.xlu0 0
        %1003 = vperm.xlu0 %1002, %v979
        %v1004 = vpop.permute.xlu0 %1003
        %1005 = vset.pattern.permute.xlu0 0
        %1006 = vperm.xlu0 %1005, %v981
        %v1007 = vpop.permute.xlu0 %1006
        %1008 = vset.pattern.permute.xlu0 0
        %1009 = vperm.xlu0 %1008, %v983
        %v1010 = vpop.permute.xlu0 %1009
        %1011 = vset.pattern.permute.xlu0 0
        %1012 = vperm.xlu0 %1011, %v985
        %v1013 = vpop.permute.xlu0 %1012
        %1014 = vset.pattern.permute.xlu0 0
        %1015 = vperm.xlu0 %1014, %v987
        %v1016 = vpop.permute.xlu0 %1015
        %1017 = vset.pattern.permute.xlu0 0
        %1018 = vperm.xlu0 %1017, %v989
        %v1019 = vpop.permute.xlu0 %1018
        %1020 = vset.pattern.permute.xlu0 0
        %1021 = vperm.xlu0 %1020, %v991
        %v1022 = vpop.permute.xlu0 %1021
        %1023 = vset.pattern.permute.xlu0 0
        %1024 = vperm.xlu0 %1023, %v993
        %v1025 = vpop.permute.xlu0 %1024
        %v1026 = vlaneseq
        %v1027 = vshrl.u32 %v1026, 7
        %v1028 = vsub.s32 %v672, %v1027
        %v1029 = vrot.slane %v1004, %v1028
        %v1030 = vlaneseq
        %v1031 = vshrl.u32 %v1030, 7
        %v1032 = vsub.s32 %v672, %v1031
        %v1033 = vrot.slane %v1007, %v1032
        %v1034 = vlaneseq
        %v1035 = vshrl.u32 %v1034, 7
        %v1036 = vsub.s32 %v672, %v1035
        %v1037 = vrot.slane %v1010, %v1036
        %v1038 = vlaneseq
        %v1039 = vshrl.u32 %v1038, 7
        %v1040 = vsub.s32 %v672, %v1039
        %v1041 = vrot.slane %v1013, %v1040
        %v1042 = vlaneseq
        %v1043 = vshrl.u32 %v1042, 7
        %v1044 = vsub.s32 %v672, %v1043
        %v1045 = vrot.slane %v1016, %v1044
        %v1046 = vlaneseq
        %v1047 = vshrl.u32 %v1046, 7
        %v1048 = vsub.s32 %v672, %v1047
        %v1049 = vrot.slane %v1019, %v1048
        %v1050 = vlaneseq
        %v1051 = vshrl.u32 %v1050, 7
        %v1052 = vsub.s32 %v672, %v1051
        %v1053 = vrot.slane %v1022, %v1052
        %v1054 = vlaneseq
        %v1055 = vshrl.u32 %v1054, 7
        %v1056 = vsub.s32 %v672, %v1055
        %v1057 = vrot.slane %v1025, %v1056
        %v1058 = vsel %vm705, %v1033, %v1029
        %v1059 = vsel %vm707, %v1037, %v1058
        %v1060 = vsel %vm709, %v1041, %v1059
        %v1061 = vsel %vm711, %v1045, %v1060
        %v1062 = vsel %vm713, %v1049, %v1061
        %v1063 = vsel %vm715, %v1053, %v1062
        %v1064 = vsel %vm717, %v1057, %v1063
        %1066 = vst.msk [vmem:[%s422] sm:$0xff] %vm720, %v1064
        %v1067 = vld [vmem:[%s350] sm:$0xff]
        %v1068 = vld [vmem:[%s350 + $0x8] sm:$0xff]
        %v1069 = vld [vmem:[%s350 + $0x10] sm:$0xff]
        %v1070 = vld [vmem:[%s350 + $0x18] sm:$0xff]
        %v1071 = vld [vmem:[%s350 + $0x20] sm:$0xff]
        %v1072 = vld [vmem:[%s350 + $0x28] sm:$0xff]
        %v1073 = vld [vmem:[%s350 + $0x30] sm:$0xff]
        %v1074 = vld [vmem:[%s350 + $0x38] sm:$0xff]
        %v1083 = vmul.f32 %v1004, %v1067
        %v1084 = vmul.f32 %v1007, %v1068
        %v1085 = vmul.f32 %v1010, %v1069
        %v1086 = vmul.f32 %v1013, %v1070
        %v1087 = vmul.f32 %v1016, %v1071
        %v1088 = vmul.f32 %v1019, %v1072
        %v1089 = vmul.f32 %v1022, %v1073
        %v1090 = vmul.f32 %v1025, %v1074
        %v1091 = vsel %vm435, %v1083, 0.0
        %v1092 = vrot.slane %v1091, 4
        %v1093 = vadd.f32 %v1091, %v1092
        %v1094 = vrot.slane %v1093, 2
        %v1095 = vadd.f32 %v1093, %v1094
        %v1096 = vrot.slane %v1095, 1
        %v1097 = vadd.f32 %v1095, %v1096
        %v1098 = vsel %vm435, %v1084, 0.0
        %v1099 = vrot.slane %v1098, 4
        %v1100 = vadd.f32 %v1098, %v1099
        %v1101 = vrot.slane %v1100, 2
        %v1102 = vadd.f32 %v1100, %v1101
        %v1103 = vrot.slane %v1102, 1
        %v1104 = vadd.f32 %v1102, %v1103
        %v1105 = vsel %vm435, %v1085, 0.0
        %v1106 = vrot.slane %v1105, 4
        %v1107 = vadd.f32 %v1105, %v1106
        %v1108 = vrot.slane %v1107, 2
        %v1109 = vadd.f32 %v1107, %v1108
        %v1110 = vrot.slane %v1109, 1
        %v1111 = vadd.f32 %v1109, %v1110
        %v1112 = vsel %vm435, %v1086, 0.0
        %v1113 = vrot.slane %v1112, 4
        %v1114 = vadd.f32 %v1112, %v1113
        %v1115 = vrot.slane %v1114, 2
        %v1116 = vadd.f32 %v1114, %v1115
        %v1117 = vrot.slane %v1116, 1
        %v1118 = vadd.f32 %v1116, %v1117
        %v1119 = vsel %vm435, %v1087, 0.0
        %v1120 = vrot.slane %v1119, 4
        %v1121 = vadd.f32 %v1119, %v1120
        %v1122 = vrot.slane %v1121, 2
        %v1123 = vadd.f32 %v1121, %v1122
        %v1124 = vrot.slane %v1123, 1
        %v1125 = vadd.f32 %v1123, %v1124
        %v1126 = vsel %vm435, %v1088, 0.0
        %v1127 = vrot.slane %v1126, 4
        %v1128 = vadd.f32 %v1126, %v1127
        %v1129 = vrot.slane %v1128, 2
        %v1130 = vadd.f32 %v1128, %v1129
        %v1131 = vrot.slane %v1130, 1
        %v1132 = vadd.f32 %v1130, %v1131
        %v1133 = vsel %vm435, %v1089, 0.0
        %v1134 = vrot.slane %v1133, 4
        %v1135 = vadd.f32 %v1133, %v1134
        %v1136 = vrot.slane %v1135, 2
        %v1137 = vadd.f32 %v1135, %v1136
        %v1138 = vrot.slane %v1137, 1
        %v1139 = vadd.f32 %v1137, %v1138
        %v1140 = vsel %vm435, %v1090, 0.0
        %v1141 = vrot.slane %v1140, 4
        %v1142 = vadd.f32 %v1140, %v1141
        %v1143 = vrot.slane %v1142, 2
        %v1144 = vadd.f32 %v1142, %v1143
        %v1145 = vrot.slane %v1144, 1
        %v1146 = vadd.f32 %v1144, %v1145
        %v1155 = vsel %vm705, %v1104, %v1097
        %v1156 = vsel %vm707, %v1111, %v1155
        %v1157 = vsel %vm709, %v1118, %v1156
        %v1158 = vsel %vm711, %v1125, %v1157
        %v1159 = vsel %vm713, %v1132, %v1158
        %v1160 = vsel %vm715, %v1139, %v1159
        %v1161 = vsel %vm717, %v1146, %v1160
        %1163 = vst.msk [vmem:[%s402] sm:$0xff] %vm435, %v1161
        %s1164 = sand.u32 %s202, 1
        %s1165 = scalar_lea.sflag [#allocation4], %s1164
        %s1166 = sand.u32 %s202, 1
        %s1167 = smul.addr %s1166, 8
        %s1168 = scalar_lea.vmem [#allocation8], %s1167
        %p1169 = scmp.lt.s32.totalorder %s27, 1
        %s1170 = scalar_select %p1169, %s27, 1
        %s1171 = smul.addr %s1170, 8
        %s1172 = scalar_lea.vmem %s8, %s1171
        // Predicated region
        $region61: #{tpu_custom_call.1} parent=47 // pred_check
          %p1173 = pneg %p212
        $region62: #{tpu_custom_call.1} parent=47 // pred_check_branch
          %1175 = sbr.rel (%p1173) target = $region64
        $region63: #{tpu_custom_call.1} parent=47 // pred_region
          %s1177 = ssub.s32 128, 128
          %1178 = vsyncadd %s1165, %s1177
          %s1179 = smul.addr %s27, 128
          %s1180 = scalar_lea.hbm %s7, %s1179
          %s1182 = sshll.u32 %s1168, 4
          %s1183 = int_to_ptr.vmem [resolvable:$true] %s1182
          %1185 = dma.vmem_to_hbm [thread:$0]  %s1183, 128, %s1180, %s1165
        $region64: #{tpu_custom_call.1} parent=47 // pred_fallthru
          _
        // Predicated region
        $region65: #{tpu_custom_call.1} parent=47 // pred_check
          %p1186 = pneg %p238
        $region66: #{tpu_custom_call.1} parent=47 // pred_check_branch
          %1188 = sbr.rel (%p1186) target = $region68
        $region67: #{tpu_custom_call.1} parent=47 // pred_region
          _
        $region68: #{tpu_custom_call.1} parent=47 // pred_fallthru
          _
      $region48: #{tpu_custom_call.1} parent=5 // pred_fallthru
        _
      %p1189 = scmp.le.s32.totalorder 2, %s22
      // Predicated region
      $region69: #{tpu_custom_call.1} parent=5 // pred_check
        %p1190 = pneg %p1189
      $region70: #{tpu_custom_call.1} parent=5 // pred_check_branch
        %1192 = sbr.rel (%p1190) target = $region72
      $region71: #{tpu_custom_call.1} parent=5 // pred_region
        %s1193 = ssub.s32 %s22, 2
        // Predicated region
        $region73: #{tpu_custom_call.1} parent=71 // pred_check
          %p1194 = pneg %p218
        $region74: #{tpu_custom_call.1} parent=71 // pred_check_branch
          %1196 = sbr.rel (%p1194) target = $region76
        $region75: #{tpu_custom_call.1} parent=71 // pred_region
          %s1197 = sand.u32 %s203, 1
          %s1198 = scalar_lea.sflag [#allocation4], %s1197
          %s1199 = sand.u32 %s203, 1
          %s1200 = smul.addr %s1199, 8
          %s1201 = scalar_lea.vmem [#allocation8], %s1200
          %1202 = dma.done %s1198, 128
        $region76: #{tpu_custom_call.1} parent=71 // pred_fallthru
          _
        // Predicated region
        $region77: #{tpu_custom_call.1} parent=71 // pred_check
          %p1203 = pneg %p244
        $region78: #{tpu_custom_call.1} parent=71 // pred_check_branch
          %1205 = sbr.rel (%p1203) target = $region80
        $region79: #{tpu_custom_call.1} parent=71 // pred_region
          %p1206 = scmp.lt.s32.totalorder %s28, 1
          %s1207 = scalar_select %p1206, %s28, 1
          %s1208 = smul.addr %s1207, 8
          %s1209 = scalar_lea.vmem %s8, %s1208
        $region80: #{tpu_custom_call.1} parent=71 // pred_fallthru
          _
      $region72: #{tpu_custom_call.1} parent=5 // pred_fallthru
        _
    $region6: #{tpu_custom_call.1} parent=1 // loop_footer
      %s26 = sadd.s32 1, %s22
    $region7: #{tpu_custom_call.1} parent=1 // loop_footer_branch
      %21 = sbr.rel target = $region3
    $region8: #{tpu_custom_call.1} parent=1 // loop_exit
      _
    %1210 = vsyncpa [#allocation3], 1
    %s1211 = scalar_lea.sflag [#allocation3], 1
    %1212 = vsyncpa %s1211, 1
    %1213 = vsyncpa [#allocation6], 1
    %s1214 = scalar_lea.sflag [#allocation6], 1
    %1215 = vsyncpa %s1214, 1
    %1216 = vsyncpa [#allocation4], 1
    %s1217 = scalar_lea.sflag [#allocation4], 1
    %1218 = vsyncpa %s1217, 1

</llo_original>
